<compile_context>
chip_gen: v6e
topology: v6e:2x2x1
jax: 0.10.0
libtpu: 0.0.40
codegen_flags: <defaults>
</compile_context>

<pallas_src>
import math

import jax
import jax.numpy as jnp
from jax.experimental import pallas as pl
from jax.experimental.pallas import tpu as pltpu

_VMEM_LIMIT = 64 * 1024 * 1024


# ---------------------------------------------------------------------------
# Tile selection helper: only (align)-multiples or the full dimension, so the
# (8, 128) BlockSpec divisibility rule is always satisfied.
# ---------------------------------------------------------------------------

def _pick_tile(dim, cap, align):
    if dim <= cap:
        return dim
    t = (cap // align) * align
    while t >= align:
        if dim % t == 0:
            return t
        t -= align
    return dim  # full dimension is always a legal block


# ---------------------------------------------------------------------------
# Tiled matmul kernel - used for all bias-free linear projections.
# ---------------------------------------------------------------------------

def _matmul_kernel(x_ref, w_ref, o_ref, acc_ref):
    @pl.when(pl.program_id(2) == 0)
    def _():
        acc_ref[...] = jnp.zeros_like(acc_ref)

    acc_ref[...] += jnp.dot(x_ref[...], w_ref[...],
                            preferred_element_type=jnp.float32)

    @pl.when(pl.program_id(2) == pl.num_programs(2) - 1)
    def _():
        o_ref[...] = acc_ref[...].astype(o_ref.dtype)


def linear_nobias(x2d, w, *, tm_cap=256, tn_cap=512, tk_cap=512):
    """y = x2d @ w ; x2d: (M, K), w: (K, N).  Equivalent to nn.Linear(bias=False)."""
    M, K = x2d.shape
    K2, N = w.shape
    assert K == K2
    tm = _pick_tile(M, tm_cap, 8)
    tn = _pick_tile(N, tn_cap, 128)
    tk = _pick_tile(K, tk_cap, 128)
    grid = (M // tm, N // tn, K // tk)
    return pl.pallas_call(
        _matmul_kernel,
        out_shape=jax.ShapeDtypeStruct((M, N), x2d.dtype),
        grid=grid,
        in_specs=[
            pl.BlockSpec((tm, tk), lambda i, j, k: (i, k)),
            pl.BlockSpec((tk, tn), lambda i, j, k: (k, j)),
        ],
        out_specs=pl.BlockSpec((tm, tn), lambda i, j, k: (i, j)),
        scratch_shapes=[pltpu.VMEM((tm, tn), jnp.float32)],
        compiler_params=pltpu.CompilerParams(
            dimension_semantics=("parallel", "parallel", "arbitrary"),
            vmem_limit_bytes=_VMEM_LIMIT),
    )(x2d, w)


# ---------------------------------------------------------------------------
# Fused flash-style attention kernel (online softmax, f32 accumulators).
# Heads are processed in lane-dense groups of `hpg` heads (hpg * d_k columns).
# ---------------------------------------------------------------------------

def _heads_per_group(num_heads, d_k):
    """Smallest divisor of num_heads whose column width (hg * d_k) is lane dense."""
    for hg in range(1, num_heads + 1):
        if num_heads % hg == 0 and (hg * d_k) % 128 == 0:
            return hg
    return num_heads  # fall back: one group spanning the full feature dim


def _make_flash_kernel(d_k, has_bias):
    def kernel(*refs):
        if has_bias:
            q_ref, k_ref, v_ref, bias_ref, o_ref, m_sc, l_sc, acc_sc = refs
        else:
            q_ref, k_ref, v_ref, o_ref, m_sc, l_sc, acc_sc = refs
            bias_ref = None
        heads = q_ref.shape[1] // d_k
        ki = pl.program_id(3)

        @pl.when(ki == 0)
        def _():
            m_sc[...] = jnp.full(m_sc.shape, -jnp.inf, m_sc.dtype)
            l_sc[...] = jnp.zeros_like(l_sc)
            acc_sc[...] = jnp.zeros_like(acc_sc)

        bias = bias_ref[...].astype(jnp.float32) if has_bias else None  # (1|TQ, TK)

        for hd in range(heads):           # static unroll over the heads in the group
            c0, c1 = hd * d_k, (hd + 1) * d_k
            qh = q_ref[:, c0:c1]          # (TQ, d_k) - 1/sqrt(d_k) folded into W_q
            kh = k_ref[:, c0:c1]          # (TK, d_k)
            vh = v_ref[:, c0:c1]          # (TK, d_k)

            # scores = q @ k^T, f32 accumulation on the MXU, native operand dtype
            s = jax.lax.dot_general(qh, kh, (((1,), (1,)), ((), ())),
                                    preferred_element_type=jnp.float32)   # (TQ, TK)
            if has_bias:
                s = s + bias              # additive mask bias (0 keep / -1e9 mask)

            # Online softmax update.
            m_prev = m_sc[hd]                                   # (TQ, 1)
            m_new = jnp.maximum(m_prev, s.max(axis=-1, keepdims=True))
            alpha = jnp.exp(m_prev - m_new)
            p = jnp.exp(s - m_new)
            l_sc[hd] = alpha * l_sc[hd] + p.sum(axis=-1, keepdims=True)
            acc_sc[hd] = alpha * acc_sc[hd] + jnp.dot(
                p.astype(vh.dtype), vh, preferred_element_type=jnp.float32)
            m_sc[hd] = m_new

        @pl.when(ki == pl.num_programs(3) - 1)
        def _():
            for hd in range(heads):
                c0, c1 = hd * d_k, (hd + 1) * d_k
                # Exact divide at finalize (once per q tile), lane-dense output block.
                o_ref[:, c0:c1] = (acc_sc[hd] / l_sc[hd]).astype(o_ref.dtype)

    return kernel


def _col_map(col_off, use_query_index):
    if use_query_index:
        return lambda b, g, qi, ki: (b, qi, g + col_off)
    return lambda b, g, qi, ki: (b, ki, g + col_off)


def flash_mha(q_arr, k_arr, v_arr, bias, *, num_heads, d_k,
              col_offs=(0, 0, 0), tq_cap=128, tk_cap=512):
    """Flash attention over head groups.

    q/k/v_arr: (B, S, C) arrays; for grid index g the head group lives in the
    column slab [(g + col_off) * gw : ... + gw] of the last dim (gw = hpg * d_k).
    For the fused self-attention path all three are the same (B, S, 3*D) array
    with col_offs selecting the Q / K / V column ranges.
    bias: None, or additive f32 bias (B, 1, Sk) / (B, Sq, Sk) (0 keep, -1e9 mask).
    Returns the context in (B, Sq, num_heads * d_k) "concatenated heads" layout.
    """
    B, Sq, _ = q_arr.shape
    Sk = k_arr.shape[1]
    D = num_heads * d_k
    hpg = _heads_per_group(num_heads, d_k)
    gw = hpg * d_k
    n_groups = num_heads // hpg
    TQ = _pick_tile(Sq, tq_cap, 8)
    TK = _pick_tile(Sk, tk_cap, 128)
    grid = (B, n_groups, Sq // TQ, Sk // TK)

    in_specs = [
        pl.BlockSpec((None, TQ, gw), _col_map(col_offs[0], True)),
        pl.BlockSpec((None, TK, gw), _col_map(col_offs[1], False)),
        pl.BlockSpec((None, TK, gw), _col_map(col_offs[2], False)),
    ]
    args = [q_arr, k_arr, v_arr]
    has_bias = bias is not None
    if has_bias:
        if bias.shape[1] == 1:
            in_specs.append(pl.BlockSpec((None, 1, TK),
                                         lambda b, g, qi, ki: (b, 0, ki)))
        else:
            in_specs.append(pl.BlockSpec((None, TQ, TK),
                                         lambda b, g, qi, ki: (b, qi, ki)))
        args.append(bias)

    return pl.pallas_call(
        _make_flash_kernel(d_k, has_bias),
        out_shape=jax.ShapeDtypeStruct((B, Sq, D), q_arr.dtype),
        grid=grid,
        in_specs=in_specs,
        out_specs=pl.BlockSpec((None, TQ, gw), lambda b, g, qi, ki: (b, qi, g)),
        scratch_shapes=[
            pltpu.VMEM((hpg, TQ, 1), jnp.float32),     # running max
            pltpu.VMEM((hpg, TQ, 1), jnp.float32),     # running sum
            pltpu.VMEM((hpg, TQ, d_k), jnp.float32),   # output accumulator
        ],
        compiler_params=pltpu.CompilerParams(
            dimension_semantics=("parallel", "parallel", "parallel", "arbitrary"),
            vmem_limit_bytes=_VMEM_LIMIT),
    )(*args)


def _mask_to_bias(mask, batch, sk):
    """PyTorch-style 0/1 mask (broadcastable to (B, 1, Sq, Sk), head dim == 1)
    -> small additive f32 bias of shape (B, 1, Sk) or (B, Sq, Sk)."""
    if mask is None:
        return None
    m = jnp.asarray(mask)
    while m.ndim < 4:
        m = m[None]
    if m.shape[1] != 1:
        raise NotImplementedError("per-head attention masks are not supported")
    m = m[:, 0]                                              # (B?, Sq or 1, Sk?)
    bias = jnp.where(m == 0, jnp.float32(-1e9), jnp.float32(0.0))
    return jnp.broadcast_to(bias, (batch, bias.shape[-2], sk))


# ---------------------------------------------------------------------------
# Module wrapper (mirrors the PyTorch MultiHeadAttentionBlock forward).
# ---------------------------------------------------------------------------

class MultiHeadAttentionBlock:
    def __init__(self, d_model: int, h: int, dropout: float, key):
        assert d_model % h == 0, "d_model is not divisible by h"
        self.d_model = d_model
        self.h = h
        self.d_k = d_model // h
        self.dropout = dropout  # TODO(synk): dropout on attention probs is identity (eval mode).
        bound = 1.0 / math.sqrt(d_model)
        kq, kk, kv, ko = jax.random.split(key, 4)
        # Stored as (in_features, out_features) so y = x @ W  (== torch x @ W.T).
        self.w_q = jax.random.uniform(kq, (d_model, d_model), jnp.float32, -bound, bound)
        self.w_k = jax.random.uniform(kk, (d_model, d_model), jnp.float32, -bound, bound)
        self.w_v = jax.random.uniform(kv, (d_model, d_model), jnp.float32, -bound, bound)
        self.w_o = jax.random.uniform(ko, (d_model, d_model), jnp.float32, -bound, bound)
        # Fold 1/sqrt(d_k) into the query projection so the attention kernel never
        # scales the (TQ, TK) score tile; also keep a fused QKV weight for the
        # self-attention fast path (activation read from HBM once).
        scale = 1.0 / math.sqrt(self.d_k)
        self._w_q_scaled = self.w_q * scale
        self._w_qkv = jnp.concatenate([self._w_q_scaled, self.w_k, self.w_v], axis=1)

    def __call__(self, q, k, v, mask):
        B, Sq, D = q.shape
        Sk = k.shape[1]
        assert D == self.d_model
        hpg = _heads_per_group(self.h, self.d_k)
        gw = hpg * self.d_k
        bias = _mask_to_bias(mask, B, Sk)

        # TODO(synk): self.attention_scores (the full (B,H,Sq,Sk) softmax matrix) is
        # not materialized - the kernel uses a flash-style streaming softmax.
        if (q is k) and (q is v) and gw % 128 == 0:
            # Self-attention fast path: one fused QKV projection matmul; the flash
            # kernel reads Q/K/V directly out of the fused (B, Sq, 3*D) activation.
            qkv = linear_nobias(q.reshape(B * Sq, D), self._w_qkv).reshape(B, Sq, 3 * D)
            n_groups = D // gw
            ctx = flash_mha(qkv, qkv, qkv, bias, num_heads=self.h, d_k=self.d_k,
                            col_offs=(0, n_groups, 2 * n_groups))
        else:
            query = linear_nobias(q.reshape(B * Sq, D), self._w_q_scaled).reshape(B, Sq, D)
            key_ = linear_nobias(k.reshape(B * Sk, D), self.w_k).reshape(B, Sk, D)
            value = linear_nobias(v.reshape(B * Sk, D), self.w_v).reshape(B, Sk, D)
            ctx = flash_mha(query, key_, value, bias, num_heads=self.h, d_k=self.d_k)

        # ctx is already in (B, Sq, d_model) "concatenated heads" layout - no transpose.
        return linear_nobias(ctx.reshape(B * Sq, D), self.w_o).reshape(B, Sq, D)


# ---------------------------------------------------------------------------
# Pure-JAX reference (for the correctness self-check).
# ---------------------------------------------------------------------------

def _reference_mha(q, k, v, mask, w_q, w_k, w_v, w_o, h):
    B, Sq, D = q.shape
    Sk = k.shape[1]
    d_k = D // h

    def split(t, S):
        return t.reshape(B, S, h, d_k).transpose(0, 2, 1, 3)

    Q = split(q @ w_q, Sq)
    K = split(k @ w_k, Sk)
    V = split(v @ w_v, Sk)
    s = jnp.einsum("bhqd,bhkd->bhqk", Q, K) / math.sqrt(d_k)
    if mask is not None:
        s = jnp.where(mask == 0, -1e9, s)
    a = jax.nn.softmax(s, axis=-1)
    o = jnp.einsum("bhqk,bhkd->bhqd", a, V)
    o = o.transpose(0, 2, 1, 3).reshape(B, Sq, D)
    return o @ w_o


if __name__ == "__main__":
    batch, seq, d_model, h = 2, 16, 128, 8   # lane-dense d_model (multiple of 128)

    root = jax.random.PRNGKey(0)
    k_init, kx, kq2, kk2, kv2 = jax.random.split(root, 5)

    mha = MultiHeadAttentionBlock(d_model, h, dropout=0.0, key=k_init)

    # Case 1: self-attention (fused QKV path) with a key-padding mask.
    x = jax.random.normal(kx, (batch, seq, d_model), jnp.float32)
    valid = jnp.arange(seq)[None, :] < jnp.array([[seq], [seq - 4]])
    mask = valid.astype(jnp.float32).reshape(batch, 1, 1, seq)

    out1 = jax.block_until_ready(mha(x, x, x, mask))
    ref1 = _reference_mha(x, x, x, mask, mha.w_q, mha.w_k, mha.w_v, mha.w_o, h)
    assert out1.shape == (batch, seq, d_model)
    err1 = float(jnp.max(jnp.abs(out1 - ref1)))
    assert jnp.allclose(out1, ref1, atol=2e-3, rtol=2e-3), f"self-attn max_err={err1}"

    # Case 2: cross-attention (separate projections), no mask (bias-free kernel).
    q2 = jax.random.normal(kq2, (batch, seq, d_model), jnp.float32)
    k2 = jax.random.normal(kk2, (batch, seq, d_model), jnp.float32)
    v2 = jax.random.normal(kv2, (batch, seq, d_model), jnp.float32)

    out2 = jax.block_until_ready(mha(q2, k2, v2, None))
    ref2 = _reference_mha(q2, k2, v2, None, mha.w_q, mha.w_k, mha.w_v, mha.w_o, h)
    err2 = float(jnp.max(jnp.abs(out2 - ref2)))
    assert jnp.allclose(out2, ref2, atol=2e-3, rtol=2e-3), f"cross-attn max_err={err2}"

    print("KERNEL_OK")
</pallas_src>

<mosaic_0001>
module attributes {stable_mosaic.version = 11 : i64} {
  func.func @_matmul_kernel(%arg0: i32, %arg1: i32, %arg2: i32, %arg3: memref<32x128xf32, #tpu.memory_space<vmem>>, %arg4: memref<128x384xf32, #tpu.memory_space<vmem>>, %arg5: memref<32x384xf32, #tpu.memory_space<vmem>>, %arg6: memref<32x384xf32, #tpu.memory_space<vmem>>) attributes {dimension_semantics = [#tpu.dimension_semantics<parallel>, #tpu.dimension_semantics<parallel>, #tpu.dimension_semantics<arbitrary>], iteration_bounds = array<i64: 1, 1, 1>, scalar_prefetch = 0 : i64, scratch_operands = 1 : i64, tpu.core_type = #tpu.core_type<tc>, window_params = [{transform_indices = @transform_0, window_bounds = array<i64: 32, 128>}, {transform_indices = @transform_1, window_bounds = array<i64: 128, 384>}, {transform_indices = @transform_2, window_bounds = array<i64: 32, 384>}]} {
    %c0_i32 = arith.constant 0 : i32
    %0 = arith.cmpi eq, %arg2, %c0_i32 : i32
    %1 = arith.extui %0 : i1 to i32
    %c0_i32_0 = arith.constant 0 : i32
    %2 = arith.cmpi ne, %1, %c0_i32_0 : i32
    scf.if %2 {
      %cst_10 = arith.constant 0.000000e+00 : f32
      %12 = vector.broadcast %cst_10 : f32 to vector<32x384xf32>
      %c0_11 = arith.constant 0 : index
      %c0_12 = arith.constant 0 : index
      %13 = vector.load %arg6[%c0_11, %c0_12] : memref<32x384xf32, #tpu.memory_space<vmem>>, vector<32x384xf32>
      tpu.vector_store %arg6[%c0_11, %c0_12], %12 {strides = array<i32>} : memref<32x384xf32, #tpu.memory_space<vmem>>, vector<32x384xf32>,
    } else {
    }
    %c0 = arith.constant 0 : index
    %c0_1 = arith.constant 0 : index
    %3 = vector.load %arg6[%c0, %c0_1] : memref<32x384xf32, #tpu.memory_space<vmem>>, vector<32x384xf32>
    %c0_2 = arith.constant 0 : index
    %c0_3 = arith.constant 0 : index
    %4 = vector.load %arg3[%c0_2, %c0_3] : memref<32x128xf32, #tpu.memory_space<vmem>>, vector<32x128xf32>
    %c0_4 = arith.constant 0 : index
    %c0_5 = arith.constant 0 : index
    %5 = vector.load %arg4[%c0_4, %c0_5] : memref<128x384xf32, #tpu.memory_space<vmem>>, vector<128x384xf32>
    %cst = arith.constant dense<0.000000e+00> : vector<32x384xf32>
    %6 = tpu.matmul %4, %5, %cst {dimension_numbers = #tpu.dot_dimension_numbers<[1], [0], [0], [1], [0, 0, 1, 1], [], []>} : vector<32x128xf32>, vector<128x384xf32>, vector<32x384xf32> -> vector<32x384xf32>
    %7 = arith.addf %3, %6 : vector<32x384xf32>
    %c0_6 = arith.constant 0 : index
    %c0_7 = arith.constant 0 : index
    %8 = vector.load %arg6[%c0_6, %c0_7] : memref<32x384xf32, #tpu.memory_space<vmem>>, vector<32x384xf32>
    tpu.vector_store %arg6[%c0_6, %c0_7], %7 {strides = array<i32>} : memref<32x384xf32, #tpu.memory_space<vmem>>, vector<32x384xf32>,
    %c0_i32_8 = arith.constant 0 : i32
    %9 = arith.cmpi eq, %arg2, %c0_i32_8 : i32
    %10 = arith.extui %9 : i1 to i32
    %c0_i32_9 = arith.constant 0 : i32
    %11 = arith.cmpi ne, %10, %c0_i32_9 : i32
    scf.if %11 {
      %c0_10 = arith.constant 0 : index
      %c0_11 = arith.constant 0 : index
      %12 = vector.load %arg6[%c0_10, %c0_11] : memref<32x384xf32, #tpu.memory_space<vmem>>, vector<32x384xf32>
      %c0_12 = arith.constant 0 : index
      %c0_13 = arith.constant 0 : index
      %13 = vector.load %arg5[%c0_12, %c0_13] : memref<32x384xf32, #tpu.memory_space<vmem>>, vector<32x384xf32>
      tpu.vector_store %arg5[%c0_12, %c0_13], %12 {strides = array<i32>} : memref<32x384xf32, #tpu.memory_space<vmem>>, vector<32x384xf32>,
    } else {
    }
    return
  }
  func.func @transform_0(%arg0: i32, %arg1: i32, %arg2: i32) -> (i32, i32) {
    %c0_i32 = arith.constant 0 : i32
    return %arg0, %arg2 : i32, i32
  }
  func.func @transform_1(%arg0: i32, %arg1: i32, %arg2: i32) -> (i32, i32) {
    %c0_i32 = arith.constant 0 : i32
    return %arg2, %arg1 : i32, i32
  }
  func.func @transform_2(%arg0: i32, %arg1: i32, %arg2: i32) -> (i32, i32) {
    %c0_i32 = arith.constant 0 : i32
    return %arg0, %arg1 : i32, i32
  }
}

</mosaic_0001>

<llo_original>
// kernel: tpu_custom_call.1
$region0: #{tpu_custom_call.1}
  #allocation0 [shape = 'u32[]', space=smem, size = 0x4, offset = 0x4, fixed_abs, tag = 'smem constant byte address 0x4 - core index']
  #allocation1 [shape = 'u32[144,128]{1,0:T(1,128)}', space=vmem, size = 0x12000, scoped, tag = 'internal scratch']
  #allocation2 [shape = 'f32[32,384]{1,0:T(8,128)}', space=vmem, size = 0xc000, scoped, tag = 'scratch operand']
  %s0 = inlined_call_operand.hbm [shape: f32[32,128], index: 0, kind: input, shape index: {}]
  %s1 = inlined_call_operand.hbm [shape: f32[128,384], index: 1, kind: input, shape index: {}]
  %s2 = inlined_call_operand.hbm [shape: f32[32,384], index: 2, kind: output, shape index: {}]
  %s3 = sld [smem:[#allocation0]]
  $region34: #{tpu_custom_call.1} parent=0
    _
  %s5 = ssub.s32 1, %s3
  %s6 = scalar_select 0, %s5, %s3
  $region1: #{tpu_custom_call.1} parent=0
    #allocation3 [shape = 'u8[16384]{0}', space=vmem, size = 0x4000, scoped, tag = 'input window, operand 0, single buffered']
    #allocation4 [shape = 's32[1]{0}', space=sflag, size = 0x4, scoped, tag = 'scoped memory for tpu_custom_call.1']
    #allocation5 [shape = 's32[1]{0}', space=sflag, size = 0x4, scoped, tag = 'scoped memory for tpu_custom_call.1']
    #allocation6 [shape = 'u8[196608]{0}', space=vmem, size = 0x30000, scoped, tag = 'input window, operand 1, single buffered']
    #allocation7 [shape = 's32[1]{0}', space=sflag, size = 0x4, scoped, tag = 'scoped memory for tpu_custom_call.1']
    #allocation8 [shape = 'u8[49152]{0}', space=vmem, size = 0xc000, scoped, tag = 'output window, operand 0, single buffered']
    %7 = vsyncpa [#allocation4], 0
    %8 = vsyncpa [#allocation7], 0
    %9 = vsyncpa [#allocation5], 0
    // Predicated region
    $region2: #{tpu_custom_call.1} parent=1 // pred_check
      _
    $region3: #{tpu_custom_call.1} parent=1 // pred_check_branch
      %11 = sbr.rel (0) target = $region5
    $region4: #{tpu_custom_call.1} parent=1 // pred_region
      %s13 = ssub.s32 512, 512
      %14 = vsyncadd [#allocation4], %s13
      %s15 = sshll.u32 [#allocation3], 4
      %s16 = int_to_ptr.vmem [resolvable:$true] %s15
      %21 = dma.hbm_to_vmem [thread:$0]  %s0, 512, %s16, [#allocation4], 128, 128, 8
    $region5: #{tpu_custom_call.1} parent=1 // pred_fallthru
      _
    // Predicated region
    $region6: #{tpu_custom_call.1} parent=1 // pred_check
      _
    $region7: #{tpu_custom_call.1} parent=1 // pred_check_branch
      %23 = sbr.rel (0) target = $region9
    $region8: #{tpu_custom_call.1} parent=1 // pred_region
      %s25 = ssub.s32 6144, 6144
      %26 = vsyncadd [#allocation7], %s25
      %s27 = sshll.u32 [#allocation6], 4
      %s28 = int_to_ptr.vmem [resolvable:$true] %s27
      %33 = dma.hbm_to_vmem [thread:$0]  %s1, 6144, %s28, [#allocation7], 384, 384, 24
    $region9: #{tpu_custom_call.1} parent=1 // pred_fallthru
      _
    // Predicated region
    $region10: #{tpu_custom_call.1} parent=1 // pred_check
      _
    $region11: #{tpu_custom_call.1} parent=1 // pred_check_branch
      %35 = sbr.rel (0) target = $region13
    $region12: #{tpu_custom_call.1} parent=1 // pred_region
      %36 = dma.done [#allocation4], 512
    $region13: #{tpu_custom_call.1} parent=1 // pred_fallthru
      _
    // Predicated region
    $region14: #{tpu_custom_call.1} parent=1 // pred_check
      _
    $region15: #{tpu_custom_call.1} parent=1 // pred_check_branch
      %38 = sbr.rel (0) target = $region17
    $region16: #{tpu_custom_call.1} parent=1 // pred_region
      %39 = dma.done [#allocation7], 6144
    $region17: #{tpu_custom_call.1} parent=1 // pred_fallthru
      _
    %p40 = scmp.eq.s32.totalorder 0, 0
    // Predicated region
    $region18: #{tpu_custom_call.1} parent=1 // pred_check
      %p41 = pneg %p40
    $region19: #{tpu_custom_call.1} parent=1 // pred_check_branch
      %43 = sbr.rel (%p41) target = $region21
    $region20: #{tpu_custom_call.1} parent=1 // pred_region
      %44 = vst [vmem:[#allocation2] sm:$0xff] 0.0
      %45 = vst [vmem:[#allocation2 + $0x8] sm:$0xff] 0.0
      %46 = vst [vmem:[#allocation2 + $0x10] sm:$0xff] 0.0
      %47 = vst [vmem:[#allocation2 + $0x18] sm:$0xff] 0.0
      %48 = vst [vmem:[#allocation2 + $0x20] sm:$0xff] 0.0
      %49 = vst [vmem:[#allocation2 + $0x28] sm:$0xff] 0.0
      %50 = vst [vmem:[#allocation2 + $0x30] sm:$0xff] 0.0
      %51 = vst [vmem:[#allocation2 + $0x38] sm:$0xff] 0.0
      %52 = vst [vmem:[#allocation2 + $0x40] sm:$0xff] 0.0
      %53 = vst [vmem:[#allocation2 + $0x48] sm:$0xff] 0.0
      %54 = vst [vmem:[#allocation2 + $0x50] sm:$0xff] 0.0
      %55 = vst [vmem:[#allocation2 + $0x58] sm:$0xff] 0.0
    $region21: #{tpu_custom_call.1} parent=1 // pred_fallthru
      _
    %v56 = vld [vmem:[#allocation2] sm:$0xff]
    %v57 = vld [vmem:[#allocation2 + $0x8] sm:$0xff]
    %v58 = vld [vmem:[#allocation2 + $0x10] sm:$0xff]
    %v59 = vld [vmem:[#allocation2 + $0x18] sm:$0xff]
    %v60 = vld [vmem:[#allocation2 + $0x20] sm:$0xff]
    %v61 = vld [vmem:[#allocation2 + $0x28] sm:$0xff]
    %v62 = vld [vmem:[#allocation2 + $0x30] sm:$0xff]
    %v63 = vld [vmem:[#allocation2 + $0x38] sm:$0xff]
    %v64 = vld [vmem:[#allocation2 + $0x40] sm:$0xff]
    %v65 = vld [vmem:[#allocation2 + $0x48] sm:$0xff]
    %v66 = vld [vmem:[#allocation2 + $0x50] sm:$0xff]
    %v67 = vld [vmem:[#allocation2 + $0x58] sm:$0xff]
    %v68 = vld [vmem:[#allocation3] sm:$0xff]
    %v69 = vld [vmem:[#allocation3 + $0x8] sm:$0xff]
    %v70 = vld [vmem:[#allocation3 + $0x10] sm:$0xff]
    %v71 = vld [vmem:[#allocation3 + $0x18] sm:$0xff]
    %v72 = vld [vmem:[#allocation6] sm:$0xff]
    %v73 = vld [vmem:[#allocation6 + $0x8] sm:$0xff]
    %v74 = vld [vmem:[#allocation6 + $0x10] sm:$0xff]
    %v75 = vld [vmem:[#allocation6 + $0x18] sm:$0xff]
    %v76 = vld [vmem:[#allocation6 + $0x20] sm:$0xff]
    %v77 = vld [vmem:[#allocation6 + $0x28] sm:$0xff]
    %v78 = vld [vmem:[#allocation6 + $0x30] sm:$0xff]
    %v79 = vld [vmem:[#allocation6 + $0x38] sm:$0xff]
    %v80 = vld [vmem:[#allocation6 + $0x40] sm:$0xff]
    %v81 = vld [vmem:[#allocation6 + $0x48] sm:$0xff]
    %v82 = vld [vmem:[#allocation6 + $0x50] sm:$0xff]
    %v83 = vld [vmem:[#allocation6 + $0x58] sm:$0xff]
    %v84 = vld [vmem:[#allocation6 + $0x60] sm:$0xff]
    %v85 = vld [vmem:[#allocation6 + $0x68] sm:$0xff]
    %v86 = vld [vmem:[#allocation6 + $0x70] sm:$0xff]
    %v87 = vld [vmem:[#allocation6 + $0x78] sm:$0xff]
    %v88 = vld [vmem:[#allocation6 + $0x80] sm:$0xff]
    %v89 = vld [vmem:[#allocation6 + $0x88] sm:$0xff]
    %v90 = vld [vmem:[#allocation6 + $0x90] sm:$0xff]
    %v91 = vld [vmem:[#allocation6 + $0x98] sm:$0xff]
    %v92 = vld [vmem:[#allocation6 + $0xa0] sm:$0xff]
    %v93 = vld [vmem:[#allocation6 + $0xa8] sm:$0xff]
    %v94 = vld [vmem:[#allocation6 + $0xb0] sm:$0xff]
    %v95 = vld [vmem:[#allocation6 + $0xb8] sm:$0xff]
    %v96 = vld [vmem:[#allocation6 + $0xc0] sm:$0xff]
    %v97 = vld [vmem:[#allocation6 + $0xc8] sm:$0xff]
    %v98 = vld [vmem:[#allocation6 + $0xd0] sm:$0xff]
    %v99 = vld [vmem:[#allocation6 + $0xd8] sm:$0xff]
    %v100 = vld [vmem:[#allocation6 + $0xe0] sm:$0xff]
    %v101 = vld [vmem:[#allocation6 + $0xe8] sm:$0xff]
    %v102 = vld [vmem:[#allocation6 + $0xf0] sm:$0xff]
    %v103 = vld [vmem:[#allocation6 + $0xf8] sm:$0xff]
    %v104 = vld [vmem:[#allocation6 + $0x100] sm:$0xff]
    %v105 = vld [vmem:[#allocation6 + $0x108] sm:$0xff]
    %v106 = vld [vmem:[#allocation6 + $0x110] sm:$0xff]
    %v107 = vld [vmem:[#allocation6 + $0x118] sm:$0xff]
    %v108 = vld [vmem:[#allocation6 + $0x120] sm:$0xff]
    %v109 = vld [vmem:[#allocation6 + $0x128] sm:$0xff]
    %v110 = vld [vmem:[#allocation6 + $0x130] sm:$0xff]
    %v111 = vld [vmem:[#allocation6 + $0x138] sm:$0xff]
    %v112 = vld [vmem:[#allocation6 + $0x140] sm:$0xff]
    %v113 = vld [vmem:[#allocation6 + $0x148] sm:$0xff]
    %v114 = vld [vmem:[#allocation6 + $0x150] sm:$0xff]
    %v115 = vld [vmem:[#allocation6 + $0x158] sm:$0xff]
    %v116 = vld [vmem:[#allocation6 + $0x160] sm:$0xff]
    %v117 = vld [vmem:[#allocation6 + $0x168] sm:$0xff]
    %v118 = vld [vmem:[#allocation6 + $0x170] sm:$0xff]
    %v119 = vld [vmem:[#allocation6 + $0x178] sm:$0xff]
    %120 = vmatprep.subr.mxu0 %v118
    %121 = vmatpush1.msra.mxu0 %v117
    %122 = vmatprep.subr.mxu0 %v115
    %123 = vmatpush1.msra.mxu0 %v114
    %124 = vmatprep.subr.mxu0 %v112
    %125 = vmatpush1.msra.mxu0 %v111
    %126 = vmatprep.subr.mxu0 %v109
    %127 = vmatpush1.msra.mxu0 %v108
    %128 = vmatprep.subr.mxu0 %v106
    %129 = vmatpush1.msra.mxu0 %v105
    %130 = vmatprep.subr.mxu0 %v103
    %131 = vmatpush1.msra.mxu0 %v102
    %132 = vmatprep.subr.mxu0 %v100
    %133 = vmatpush1.msra.mxu0 %v99
    %134 = vmatprep.subr.mxu0 %v97
    %135 = vmatpush1.msra.mxu0 %v96
    %136 = vmatprep.subr.mxu0 %v94
    %137 = vmatpush1.msra.mxu0 %v93
    %138 = vmatprep.subr.mxu0 %v91
    %139 = vmatpush1.msra.mxu0 %v90
    %140 = vmatprep.subr.mxu0 %v88
    %141 = vmatpush1.msra.mxu0 %v87
    %142 = vmatprep.subr.mxu0 %v85
    %143 = vmatpush1.msra.mxu0 %v84
    %144 = vmatprep.subr.mxu0 %v82
    %145 = vmatpush1.msra.mxu0 %v81
    %146 = vmatprep.subr.mxu0 %v79
    %147 = vmatpush1.msra.mxu0 %v78
    %148 = vmatprep.subr.mxu0 %v76
    %149 = vmatpush1.msra.mxu0 %v75
    %150 = vmatprep.subr.mxu0 %v73
    %151 = vmatpush1.msra.mxu0 %v72
    %152 = vmatprep.subr.mxu0 0.0
    %153 = vmatpush2.msra.mxu0 0.0
    %154 = vmatprep.subr.mxu0 0.0
    %155 = vmatpush2.msra.mxu0 0.0
    %156 = vmatprep.subr.mxu0 0.0
    %157 = vmatpush2.msra.mxu0 0.0
    %158 = vmatprep.subr.mxu0 0.0
    %159 = vmatpush2.msra.mxu0 0.0
    %160 = vmatprep.subr.mxu0 0.0
    %161 = vmatpush2.msra.mxu0 0.0
    %162 = vmatprep.subr.mxu0 0.0
    %163 = vmatpush2.msra.mxu0 0.0
    %164 = vmatprep.subr.mxu0 0.0
    %165 = vmatpush2.msra.mxu0 0.0
    %166 = vmatprep.subr.mxu0 0.0
    %167 = vmatpush2.msra.mxu0 0.0
    %168 = vmatprep.subr.mxu0 0.0
    %169 = vmatpush2.msra.mxu0 0.0
    %170 = vmatprep.subr.mxu0 0.0
    %171 = vmatpush2.msra.mxu0 0.0
    %172 = vmatprep.subr.mxu0 0.0
    %173 = vmatpush2.msra.mxu0 0.0
    %174 = vmatprep.subr.mxu0 0.0
    %175 = vmatpush2.msra.mxu0 0.0
    %176 = vmatprep.subr.mxu0 0.0
    %177 = vmatpush2.msra.mxu0 0.0
    %178 = vmatprep.subr.mxu0 0.0
    %179 = vmatpush2.msra.mxu0 0.0
    %180 = vmatprep.subr.mxu0 0.0
    %181 = vmatpush2.msra.mxu0 0.0
    %182 = vmatprep.subr.mxu0 0.0
    %183 = vmatpush2.msra.mxu0 0.0
    %184 = vmatprep.mubr.f32.mxu0 0.0
    %185 = vmatmul.mubr.f32.gmra.mxu0 %v68
    %v186 = vpop.f32.mrf.mxu0
    %v187 = vadd.f32 0.0, %v186
    %v188 = vpop.f32.mrf.mxu0
    %v189 = vadd.f32 0.0, %v188
    %190 = vmatprep.mubr.f32.mxu0 0.0
    %191 = vmatmul.mubr.f32.gmra.mxu0 %v69
    %v192 = vpop.f32.mrf.mxu0
    %v193 = vadd.f32 0.0, %v192
    %v194 = vpop.f32.mrf.mxu0
    %v195 = vadd.f32 0.0, %v194
    %196 = vmatprep.mubr.f32.mxu0 0.0
    %197 = vmatmul.mubr.f32.gmra.mxu0 %v70
    %v198 = vpop.f32.mrf.mxu0
    %v199 = vadd.f32 0.0, %v198
    %v200 = vpop.f32.mrf.mxu0
    %v201 = vadd.f32 0.0, %v200
    %202 = vmatprep.mubr.f32.mxu0 0.0
    %203 = vmatmul.mubr.f32.gmra.mxu0 %v71
    %v204 = vpop.f32.mrf.mxu0
    %v205 = vadd.f32 0.0, %v204
    %v206 = vpop.f32.mrf.mxu0
    %v207 = vadd.f32 0.0, %v206
    %208 = vdwg.mxu0
    %209 = vmatprep.subr.mxu0 0.0
    %210 = vmatpush1.msra.mxu0 %v119
    %211 = vmatprep.subr.mxu0 0.0
    %212 = vmatpush1.msra.mxu0 %v116
    %213 = vmatprep.subr.mxu0 0.0
    %214 = vmatpush1.msra.mxu0 %v113
    %215 = vmatprep.subr.mxu0 0.0
    %216 = vmatpush1.msra.mxu0 %v110
    %217 = vmatprep.subr.mxu0 0.0
    %218 = vmatpush1.msra.mxu0 %v107
    %219 = vmatprep.subr.mxu0 0.0
    %220 = vmatpush1.msra.mxu0 %v104
    %221 = vmatprep.subr.mxu0 0.0
    %222 = vmatpush1.msra.mxu0 %v101
    %223 = vmatprep.subr.mxu0 0.0
    %224 = vmatpush1.msra.mxu0 %v98
    %225 = vmatprep.subr.mxu0 0.0
    %226 = vmatpush1.msra.mxu0 %v95
    %227 = vmatprep.subr.mxu0 0.0
    %228 = vmatpush1.msra.mxu0 %v92
    %229 = vmatprep.subr.mxu0 0.0
    %230 = vmatpush1.msra.mxu0 %v89
    %231 = vmatprep.subr.mxu0 0.0
    %232 = vmatpush1.msra.mxu0 %v86
    %233 = vmatprep.subr.mxu0 0.0
    %234 = vmatpush1.msra.mxu0 %v83
    %235 = vmatprep.subr.mxu0 0.0
    %236 = vmatpush1.msra.mxu0 %v80
    %237 = vmatprep.subr.mxu0 0.0
    %238 = vmatpush1.msra.mxu0 %v77
    %239 = vmatprep.subr.mxu0 0.0
    %240 = vmatpush1.msra.mxu0 %v74
    %241 = vmatprep.subr.mxu0 0.0
    %242 = vmatpush2.msra.mxu0 0.0
    %243 = vmatprep.subr.mxu0 0.0
    %244 = vmatpush2.msra.mxu0 0.0
    %245 = vmatprep.subr.mxu0 0.0
    %246 = vmatpush2.msra.mxu0 0.0
    %247 = vmatprep.subr.mxu0 0.0
    %248 = vmatpush2.msra.mxu0 0.0
    %249 = vmatprep.subr.mxu0 0.0
    %250 = vmatpush2.msra.mxu0 0.0
    %251 = vmatprep.subr.mxu0 0.0
    %252 = vmatpush2.msra.mxu0 0.0
    %253 = vmatprep.subr.mxu0 0.0
    %254 = vmatpush2.msra.mxu0 0.0
    %255 = vmatprep.subr.mxu0 0.0
    %256 = vmatpush2.msra.mxu0 0.0
    %257 = vmatprep.subr.mxu0 0.0
    %258 = vmatpush2.msra.mxu0 0.0
    %259 = vmatprep.subr.mxu0 0.0
    %260 = vmatpush2.msra.mxu0 0.0
    %261 = vmatprep.subr.mxu0 0.0
    %262 = vmatpush2.msra.mxu0 0.0
    %263 = vmatprep.subr.mxu0 0.0
    %264 = vmatpush2.msra.mxu0 0.0
    %265 = vmatprep.subr.mxu0 0.0
    %266 = vmatpush2.msra.mxu0 0.0
    %267 = vmatprep.subr.mxu0 0.0
    %268 = vmatpush2.msra.mxu0 0.0
    %269 = vmatprep.subr.mxu0 0.0
    %270 = vmatpush2.msra.mxu0 0.0
    %271 = vmatprep.subr.mxu0 0.0
    %272 = vmatpush2.msra.mxu0 0.0
    %273 = vmatprep.mubr.f32.mxu0 0.0
    %274 = vmatmul.mubr.f32.gmra.mxu0 %v68
    %v275 = vpop.f32.mrf.mxu0
    %v276 = vadd.f32 0.0, %v275
    %v277 = vpop.f32.mrf.mxu0
    %278 = vmatprep.mubr.f32.mxu0 0.0
    %279 = vmatmul.mubr.f32.gmra.mxu0 %v69
    %v280 = vpop.f32.mrf.mxu0
    %v281 = vadd.f32 0.0, %v280
    %v282 = vpop.f32.mrf.mxu0
    %283 = vmatprep.mubr.f32.mxu0 0.0
    %284 = vmatmul.mubr.f32.gmra.mxu0 %v70
    %v285 = vpop.f32.mrf.mxu0
    %v286 = vadd.f32 0.0, %v285
    %v287 = vpop.f32.mrf.mxu0
    %288 = vmatprep.mubr.f32.mxu0 0.0
    %289 = vmatmul.mubr.f32.gmra.mxu0 %v71
    %v290 = vpop.f32.mrf.mxu0
    %v291 = vadd.f32 0.0, %v290
    %v292 = vpop.f32.mrf.mxu0
    %293 = vdwg.mxu0
    %v294 = vadd.f32 %v56, %v187
    %v295 = vadd.f32 %v57, %v189
    %v296 = vadd.f32 %v58, %v276
    %v297 = vadd.f32 %v59, %v193
    %v298 = vadd.f32 %v60, %v195
    %v299 = vadd.f32 %v61, %v281
    %v300 = vadd.f32 %v62, %v199
    %v301 = vadd.f32 %v63, %v201
    %v302 = vadd.f32 %v64, %v286
    %v303 = vadd.f32 %v65, %v205
    %v304 = vadd.f32 %v66, %v207
    %v305 = vadd.f32 %v67, %v291
    %306 = vst [vmem:[#allocation2] sm:$0xff] %v294
    %307 = vst [vmem:[#allocation2 + $0x8] sm:$0xff] %v295
    %308 = vst [vmem:[#allocation2 + $0x10] sm:$0xff] %v296
    %309 = vst [vmem:[#allocation2 + $0x18] sm:$0xff] %v297
    %310 = vst [vmem:[#allocation2 + $0x20] sm:$0xff] %v298
    %311 = vst [vmem:[#allocation2 + $0x28] sm:$0xff] %v299
    %312 = vst [vmem:[#allocation2 + $0x30] sm:$0xff] %v300
    %313 = vst [vmem:[#allocation2 + $0x38] sm:$0xff] %v301
    %314 = vst [vmem:[#allocation2 + $0x40] sm:$0xff] %v302
    %315 = vst [vmem:[#allocation2 + $0x48] sm:$0xff] %v303
    %316 = vst [vmem:[#allocation2 + $0x50] sm:$0xff] %v304
    %317 = vst [vmem:[#allocation2 + $0x58] sm:$0xff] %v305
    // Predicated region
    $region22: #{tpu_custom_call.1} parent=1 // pred_check
      %p318 = pneg %p40
    $region23: #{tpu_custom_call.1} parent=1 // pred_check_branch
      %320 = sbr.rel (%p318) target = $region25
    $region24: #{tpu_custom_call.1} parent=1 // pred_region
      %v321 = vld [vmem:[#allocation2] sm:$0xff]
      %v322 = vld [vmem:[#allocation2 + $0x8] sm:$0xff]
      %v323 = vld [vmem:[#allocation2 + $0x10] sm:$0xff]
      %v324 = vld [vmem:[#allocation2 + $0x18] sm:$0xff]
      %v325 = vld [vmem:[#allocation2 + $0x20] sm:$0xff]
      %v326 = vld [vmem:[#allocation2 + $0x28] sm:$0xff]
      %v327 = vld [vmem:[#allocation2 + $0x30] sm:$0xff]
      %v328 = vld [vmem:[#allocation2 + $0x38] sm:$0xff]
      %v329 = vld [vmem:[#allocation2 + $0x40] sm:$0xff]
      %v330 = vld [vmem:[#allocation2 + $0x48] sm:$0xff]
      %v331 = vld [vmem:[#allocation2 + $0x50] sm:$0xff]
      %v332 = vld [vmem:[#allocation2 + $0x58] sm:$0xff]
      %333 = vst [vmem:[#allocation8] sm:$0xff] %v321
      %334 = vst [vmem:[#allocation8 + $0x8] sm:$0xff] %v322
      %335 = vst [vmem:[#allocation8 + $0x10] sm:$0xff] %v323
      %336 = vst [vmem:[#allocation8 + $0x18] sm:$0xff] %v324
      %337 = vst [vmem:[#allocation8 + $0x20] sm:$0xff] %v325
      %338 = vst [vmem:[#allocation8 + $0x28] sm:$0xff] %v326
      %339 = vst [vmem:[#allocation8 + $0x30] sm:$0xff] %v327
      %340 = vst [vmem:[#allocation8 + $0x38] sm:$0xff] %v328
      %341 = vst [vmem:[#allocation8 + $0x40] sm:$0xff] %v329
      %342 = vst [vmem:[#allocation8 + $0x48] sm:$0xff] %v330
      %343 = vst [vmem:[#allocation8 + $0x50] sm:$0xff] %v331
      %344 = vst [vmem:[#allocation8 + $0x58] sm:$0xff] %v332
    $region25: #{tpu_custom_call.1} parent=1 // pred_fallthru
      _
    // Predicated region
    $region26: #{tpu_custom_call.1} parent=1 // pred_check
      _
    $region27: #{tpu_custom_call.1} parent=1 // pred_check_branch
      %346 = sbr.rel (0) target = $region29
    $region28: #{tpu_custom_call.1} parent=1 // pred_region
      %s348 = ssub.s32 1536, 1536
      %349 = vsyncadd [#allocation5], %s348
      %s350 = sshll.u32 [#allocation8], 4
      %s351 = int_to_ptr.vmem [resolvable:$true] %s350
      %356 = dma.vmem_to_hbm [thread:$0]  %s351, 1536, %s2, [#allocation5], 384, 384, 24
    $region29: #{tpu_custom_call.1} parent=1 // pred_fallthru
      _
    // Predicated region
    $region30: #{tpu_custom_call.1} parent=1 // pred_check
      _
    $region31: #{tpu_custom_call.1} parent=1 // pred_check_branch
      %358 = sbr.rel (0) target = $region33
    $region32: #{tpu_custom_call.1} parent=1 // pred_region
      %359 = dma.done [#allocation5], 1536
    $region33: #{tpu_custom_call.1} parent=1 // pred_fallthru
      _
    %360 = vsyncpa [#allocation4], 1
    %361 = vsyncpa [#allocation7], 1
    %362 = vsyncpa [#allocation5], 1

</llo_original>
